<compile_context>
chip_gen: v7x
topology: tpu7x:2x2x1
jax: 0.10.0
libtpu: 0.0.40
codegen_flags: <defaults>
</compile_context>

<pallas_src>
import functools

import jax
import jax.numpy as jnp
from jax.experimental import pallas as pl
from jax.experimental.pallas import tpu as pltpu


_VMEM_LIMIT_CACHE = None


def _vmem_limit_bytes():
    """min(96 MiB, 3/4 of physical VMEM): roomy on v5e/v6e, capped on v7x."""
    global _VMEM_LIMIT_CACHE
    if _VMEM_LIMIT_CACHE is None:
        try:
            cap = pltpu.get_tpu_info().vmem_capacity_bytes
            _VMEM_LIMIT_CACHE = int(min(96 * 1024 * 1024, (cap * 3) // 4))
        except Exception:  # conservative fallback that fits every generation
            _VMEM_LIMIT_CACHE = 48 * 1024 * 1024
    return _VMEM_LIMIT_CACHE


def _round_up(x, m):
    return ((x + m - 1) // m) * m


def _pad2(a, rows, cols):
    r, c = a.shape
    if r == rows and c == cols:
        return a
    return jnp.pad(a, ((0, rows - r), (0, cols - c)))


# ----------------------------------------------------------------------------
# Tiled matmul kernel with fused LayerNorm prologue and
# bias / activation / per-column-range sigmoid / residual epilogue.
# ----------------------------------------------------------------------------
def _linear_kernel(*refs, activation, fuse_residual, fuse_ln, true_k, ln_eps,
                   sigmoid_start_col, n_k):
    it = iter(refs)
    x_ref = next(it)
    w_ref = next(it)
    b_ref = next(it)
    g_ref = next(it) if fuse_ln else None
    gb_ref = next(it) if fuse_ln else None
    r_ref = next(it) if fuse_residual else None
    o_ref = next(it)
    acc_ref = next(it) if n_k > 1 else None

    x = x_ref[...]
    if fuse_ln:
        # LayerNorm fused into the matmul prologue (requires a single K block).
        # E[x^2] - E[x]^2 form so zero-padded K columns do not bias the stats.
        xf = x.astype(jnp.float32)
        inv_k = 1.0 / true_k
        mean = jnp.sum(xf, axis=-1, keepdims=True) * inv_k
        var = jnp.sum(xf * xf, axis=-1, keepdims=True) * inv_k - mean * mean
        xf = (xf - mean) * jax.lax.rsqrt(var + ln_eps)
        xf = xf * g_ref[...] + gb_ref[...]
        x = xf.astype(x_ref.dtype)

    part = jnp.dot(x, w_ref[...], preferred_element_type=jnp.float32)

    def epilogue(y):
        y = y + b_ref[...]
        if activation == "relu":
            y = jnp.maximum(y, 0.0)
        elif activation == "gelu":
            # TODO(synk): PyTorch nn.GELU defaults to exact erf; tanh approx
            # is used here for robust EUP lowering on TPU.
            y = jax.nn.gelu(y, approximate=True)
        elif activation == "sigmoid":
            y = jax.nn.sigmoid(y)
        if sigmoid_start_col is not None:
            col = (jax.lax.broadcasted_iota(jnp.int32, y.shape, 1)
                   + pl.program_id(1) * y.shape[1])
            y = jnp.where(col >= sigmoid_start_col, jax.nn.sigmoid(y), y)
        if r_ref is not None:
            y = y + r_ref[...].astype(jnp.float32)
        return y

    if n_k == 1:
        # single K block: no accumulator scratch, write the epilogue directly
        o_ref[...] = epilogue(part).astype(o_ref.dtype)
    else:
        @pl.when(pl.program_id(2) == 0)
        def _init():
            acc_ref[...] = jnp.zeros_like(acc_ref)

        acc_ref[...] += part

        @pl.when(pl.program_id(2) == n_k - 1)
        def _finalize():
            o_ref[...] = epilogue(acc_ref[...]).astype(o_ref.dtype)


def linear(x, w, b, *, activation=None, residual=None, ln=None, ln_eps=1e-6,
           sigmoid_start_col=None, out_dtype=jnp.bfloat16,
           tm_target=256, tn_target=256, tk_target=1024):
    """act(LN?(x) @ w + b) (+ residual), bf16 MXU operands, f32 accumulation.

    x: [M, K], w: [K, N], b: [1, N], residual: [M, N], ln: (gamma, beta) [1, K].
    """
    M, K = x.shape
    _, N = w.shape

    tm = min(tm_target, _round_up(M, 8))
    tn = min(tn_target, _round_up(N, 128))
    if ln is not None:
        # LN fusion needs full rows inside one K block.
        tk = _round_up(K, 128)
    else:
        tk = min(tk_target, _round_up(K, 128))
    Mp, Np, Kp = _round_up(M, tm), _round_up(N, tn), _round_up(K, tk)
    n_k = Kp // tk

    xp = _pad2(x, Mp, Kp).astype(jnp.bfloat16)
    wp = _pad2(w, Kp, Np).astype(jnp.bfloat16)
    bp = _pad2(b, 1, Np).astype(jnp.float32)

    args = [xp, wp, bp]
    in_specs = [
        pl.BlockSpec((tm, tk), lambda i, j, k: (i, k)),
        pl.BlockSpec((tk, tn), lambda i, j, k: (k, j)),
        pl.BlockSpec((1, tn), lambda i, j, k: (0, j)),
    ]
    if ln is not None:
        g, gb = ln
        args.append(_pad2(g, 1, Kp).astype(jnp.float32))
        args.append(_pad2(gb, 1, Kp).astype(jnp.float32))
        in_specs.append(pl.BlockSpec((1, tk), lambda i, j, k: (0, k)))
        in_specs.append(pl.BlockSpec((1, tk), lambda i, j, k: (0, k)))
    if residual is not None:
        args.append(_pad2(residual, Mp, Np))
        in_specs.append(pl.BlockSpec((tm, tn), lambda i, j, k: (i, j)))

    scratch = [pltpu.VMEM((tm, tn), jnp.float32)] if n_k > 1 else []

    out = pl.pallas_call(
        functools.partial(
            _linear_kernel,
            activation=activation,
            fuse_residual=residual is not None,
            fuse_ln=ln is not None,
            true_k=float(K),
            ln_eps=ln_eps,
            sigmoid_start_col=sigmoid_start_col,
            n_k=n_k,
        ),
        out_shape=jax.ShapeDtypeStruct((Mp, Np), out_dtype),
        grid_spec=pltpu.PrefetchScalarGridSpec(
            num_scalar_prefetch=0,
            grid=(Mp // tm, Np // tn, n_k),
            in_specs=in_specs,
            out_specs=pl.BlockSpec((tm, tn), lambda i, j, k: (i, j)),
            scratch_shapes=scratch,
        ),
        compiler_params=pltpu.CompilerParams(
            dimension_semantics=("parallel", "parallel", "arbitrary"),
            vmem_limit_bytes=_vmem_limit_bytes(),
        ),
    )(*args)

    if (Mp, Np) != (M, N):
        out = out[:M, :N]
    return out


# ----------------------------------------------------------------------------
# Flash attention in [B, S, H*Dh] layout: heads are split in-kernel on VMEM
# tiles (no XLA head transpose), output is written back lane-dense.
# ----------------------------------------------------------------------------
def _flash_attention_kernel(q_ref, k_ref, v_ref, o_ref, m_sc, l_sc, acc_sc, *,
                            scale, seq_len, block_kv, heads, head_dim):
    ki = pl.program_id(2)

    @pl.when(ki == 0)
    def _init():
        m_sc[...] = jnp.full_like(m_sc, -1e30)
        l_sc[...] = jnp.zeros_like(l_sc)
        acc_sc[...] = jnp.zeros_like(acc_sc)

    q = q_ref[0]  # [tq, H*Dh] bf16
    k = k_ref[0]  # [tkv, H*Dh] bf16
    v = v_ref[0]  # [tkv, H*Dh] bf16

    # mask KV positions that are sequence padding; all softmax stats stay f32
    col = (jax.lax.broadcasted_iota(jnp.int32, (q.shape[0], k.shape[0]), 1)
           + ki * block_kv)
    kv_valid = col < seq_len

    for h in range(heads):
        hs, he = h * head_dim, (h + 1) * head_dim
        s = jax.lax.dot_general(
            q[:, hs:he], k[:, hs:he], (((1,), (1,)), ((), ())),
            preferred_element_type=jnp.float32) * scale
        s = jnp.where(kv_valid, s, -1e30)

        m_prev = m_sc[h]                                      # [tq, 1] f32
        m_new = jnp.maximum(m_prev, jnp.max(s, axis=-1, keepdims=True))
        alpha = jnp.exp(m_prev - m_new)
        p = jnp.exp(s - m_new)
        l_sc[h] = alpha * l_sc[h] + jnp.sum(p, axis=-1, keepdims=True)
        acc_sc[h] = alpha * acc_sc[h] + jax.lax.dot_general(
            p.astype(v.dtype), v[:, hs:he], (((1,), (0,)), ((), ())),
            preferred_element_type=jnp.float32)
        m_sc[h] = m_new

    @pl.when(ki == pl.num_programs(2) - 1)
    def _finalize():
        # merge heads back into a lane-dense [tq, H*Dh] slab (exact reciprocal)
        merged = jnp.concatenate(
            [acc_sc[h] / l_sc[h] for h in range(heads)], axis=-1)
        o_ref[0] = merged.astype(o_ref.dtype)


def attention(q, k, v, *, heads, scale, seq_len, ts_target=256):
    """q, k, v, out: [B, Sp, H*Dh] bf16 (Sp a multiple of 8)."""
    B, Sp, D = q.shape
    head_dim = D // heads
    ts = min(ts_target, _round_up(Sp, 8))
    Sq = _round_up(Sp, ts)
    if Sq != Sp:
        pad = ((0, 0), (0, Sq - Sp), (0, 0))
        q, k, v = jnp.pad(q, pad), jnp.pad(k, pad), jnp.pad(v, pad)
    n_s = Sq // ts

    out = pl.pallas_call(
        functools.partial(
            _flash_attention_kernel,
            scale=scale, seq_len=seq_len, block_kv=ts,
            heads=heads, head_dim=head_dim,
        ),
        out_shape=jax.ShapeDtypeStruct((B, Sq, D), jnp.bfloat16),
        grid_spec=pltpu.PrefetchScalarGridSpec(
            num_scalar_prefetch=0,
            grid=(n_s, B, n_s),     # q-block axis leads (megacore-friendly)
            in_specs=[
                pl.BlockSpec((1, ts, D), lambda qi, b, ki: (b, qi, 0)),
                pl.BlockSpec((1, ts, D), lambda qi, b, ki: (b, ki, 0)),
                pl.BlockSpec((1, ts, D), lambda qi, b, ki: (b, ki, 0)),
            ],
            out_specs=pl.BlockSpec((1, ts, D), lambda qi, b, ki: (b, qi, 0)),
            scratch_shapes=[
                # TODO(synk): (H, tq, 1) stats pad the lane dim 1->128; fine
                # with ts<=256, restructure the stats layout if ts grows on v7x.
                pltpu.VMEM((heads, ts, 1), jnp.float32),
                pltpu.VMEM((heads, ts, 1), jnp.float32),
                pltpu.VMEM((heads, ts, head_dim), jnp.float32),
            ],
        ),
        compiler_params=pltpu.CompilerParams(
            dimension_semantics=("parallel", "parallel", "arbitrary"),
            vmem_limit_bytes=_vmem_limit_bytes(),
        ),
    )(q, k, v)

    if Sq != Sp:
        out = out[:, :Sp, :]
    return out


# ----------------------------------------------------------------------------
# Parameters (deterministic, synthetic — no checkpoint load)
# ----------------------------------------------------------------------------
def init_params(key, cfg):
    keys = iter(jax.random.split(key, 64))

    def nrm(shape, std=0.02, dtype=jnp.bfloat16):
        # matmul weights stored bf16 (MXU-native); biases / LN params stay f32
        return (std * jax.random.normal(next(keys), shape, jnp.float32)).astype(dtype)

    C, P, D = cfg["in_chans"], cfg["patch"], cfg["dim"]
    S = 1 + cfg["num_patches"] + cfg["det"]
    Dm = cfg["mlp_dim"]

    params = {
        "patch_w": nrm((C * P * P, D)),      # conv(kernel=stride=P) as matmul
        "patch_b": jnp.zeros((1, D), jnp.float32),
        "cls_token": nrm((1, 1, D), dtype=jnp.float32),
        "det_token": nrm((1, cfg["det"], D), dtype=jnp.float32),
        "pos_embed": nrm((1, S, D), dtype=jnp.float32),
        "norm_g": jnp.ones((1, D), jnp.float32),
        "norm_b": jnp.zeros((1, D), jnp.float32),
        "blocks": [],
    }
    for _ in range(cfg["depth"]):
        # PyTorch's fused qkv weight [D, 3D] maps to these q/k/v column slices.
        params["blocks"].append({
            "ln1_g": jnp.ones((1, D), jnp.float32),
            "ln1_b": jnp.zeros((1, D), jnp.float32),
            "q_w": nrm((D, D)), "q_b": jnp.zeros((1, D), jnp.float32),
            "k_w": nrm((D, D)), "k_b": jnp.zeros((1, D), jnp.float32),
            "v_w": nrm((D, D)), "v_b": jnp.zeros((1, D), jnp.float32),
            "proj_w": nrm((D, D)), "proj_b": jnp.zeros((1, D), jnp.float32),
            "ln2_g": jnp.ones((1, D), jnp.float32),
            "ln2_b": jnp.zeros((1, D), jnp.float32),
            "fc1_w": nrm((D, Dm)), "fc1_b": jnp.zeros((1, Dm), jnp.float32),
            "fc2_w": nrm((Dm, D)), "fc2_b": jnp.zeros((1, D), jnp.float32),
        })

    ncls = cfg["num_class"] + 1
    params["class_head"] = [
        (nrm((D, D)), jnp.zeros((1, D), jnp.float32)),
        (nrm((D, D)), jnp.zeros((1, D), jnp.float32)),
        (nrm((D, ncls)), jnp.zeros((1, ncls), jnp.float32)),
    ]
    params["bbox_head"] = [
        (nrm((D, D)), jnp.zeros((1, D), jnp.float32)),
        (nrm((D, D)), jnp.zeros((1, D), jnp.float32)),
        (nrm((D, 4)), jnp.zeros((1, 4), jnp.float32)),
    ]
    return params


def _block_diag(a, b):
    ka, na = a.shape
    kb, nb = b.shape
    top = jnp.concatenate([a, jnp.zeros((ka, nb), a.dtype)], axis=1)
    bot = jnp.concatenate([jnp.zeros((kb, na), b.dtype), b], axis=1)
    return jnp.concatenate([top, bot], axis=0)


# ----------------------------------------------------------------------------
# Forward pass (YOLOS: ViT backbone with [CLS] + patch + DET tokens, then
# 3-layer MLP class / bbox heads; bbox passed through sigmoid)
# ----------------------------------------------------------------------------
def yolos_forward(x, params, cfg):
    B, C, H, W = x.shape
    P, D = cfg["patch"], cfg["dim"]
    heads, det = cfg["heads"], cfg["det"]
    Dh = D // heads
    nh, nw = H // P, W // P
    n_patch = nh * nw

    # --- patch embedding: conv(kernel=P, stride=P) == patch-flatten matmul ---
    patches = x.reshape(B, C, nh, P, nw, P).transpose(0, 2, 4, 1, 3, 5)
    patches = patches.reshape(B * n_patch, C * P * P)
    tokens = linear(patches, params["patch_w"], params["patch_b"])
    tokens = tokens.reshape(B, n_patch, D)

    cls = jnp.broadcast_to(params["cls_token"], (B, 1, D)).astype(jnp.bfloat16)
    dtk = jnp.broadcast_to(params["det_token"], (B, det, D)).astype(jnp.bfloat16)
    seq = jnp.concatenate([cls, tokens, dtk], axis=1)
    seq = seq + params["pos_embed"].astype(jnp.bfloat16)
    S = seq.shape[1]

    # residual stream kept padded to a sublane multiple; padded rows are masked
    # as KV positions in attention and never read back.
    Sp = _round_up(S, 8)
    if Sp != S:
        seq = jnp.pad(seq, ((0, 0), (0, Sp - S), (0, 0)))
    flat = seq.reshape(B * Sp, D)                      # bf16 residual stream

    scale = Dh ** -0.5
    for blk in params["blocks"]:
        ln1 = (blk["ln1_g"], blk["ln1_b"])
        # ln1 fused into each projection; q/k/v emitted directly in [B, S, D]
        q = linear(flat, blk["q_w"], blk["q_b"], ln=ln1).reshape(B, Sp, D)
        k = linear(flat, blk["k_w"], blk["k_b"], ln=ln1).reshape(B, Sp, D)
        v = linear(flat, blk["v_w"], blk["v_b"], ln=ln1).reshape(B, Sp, D)
        a = attention(q, k, v, heads=heads, scale=scale, seq_len=S)
        a = a.reshape(B * Sp, D)
        # attn-proj matmul with fused residual add
        flat = linear(a, blk["proj_w"], blk["proj_b"], residual=flat)

        # MLP: ln2 fused into fc1 (gelu), fc2 with fused residual add
        h1 = linear(flat, blk["fc1_w"], blk["fc1_b"], activation="gelu",
                    ln=(blk["ln2_g"], blk["ln2_b"]))
        flat = linear(h1, blk["fc2_w"], blk["fc2_b"], residual=flat)

    # --- detection heads on DET tokens only (final LN fused into layer 1) ---
    det_feats = flat.reshape(B, Sp, D)[:, S - det:S, :].reshape(B * det, D)
    ncls = cfg["num_class"] + 1

    ch, bh = params["class_head"], params["bbox_head"]
    w1 = jnp.concatenate([ch[0][0], bh[0][0]], axis=1)        # [D, 2D]
    b1 = jnp.concatenate([ch[0][1], bh[0][1]], axis=1)
    w2 = _block_diag(ch[1][0], bh[1][0])                      # [2D, 2D]
    b2 = jnp.concatenate([ch[1][1], bh[1][1]], axis=1)
    w3 = _block_diag(ch[2][0], bh[2][0])                      # [2D, ncls+4]
    b3 = jnp.concatenate([ch[2][1], bh[2][1]], axis=1)

    h = linear(det_feats, w1, b1, activation="relu",
               ln=(params["norm_g"], params["norm_b"]))
    h = linear(h, w2, b2, activation="relu")
    out = linear(h, w3, b3, sigmoid_start_col=ncls, out_dtype=jnp.float32)

    outputs_class = out[:, :ncls].reshape(1, B, det, ncls)
    outputs_coord = out[:, ncls:ncls + 4].reshape(1, B, det, 4)

    # outputs_class[:-1] is empty (single pseudo-layer), so aux == []
    return {
        "class": outputs_class[-1],
        "bbox": outputs_coord[-1],
        "aux": [],
    }


# ----------------------------------------------------------------------------
def _attention_reference(q, k, v, *, heads, scale, seq_len):
    B, S, D = q.shape
    Dh = D // heads
    qf = q.astype(jnp.float32).reshape(B, S, heads, Dh).transpose(0, 2, 1, 3)
    kf = k.astype(jnp.float32).reshape(B, S, heads, Dh).transpose(0, 2, 1, 3)
    vf = v.astype(jnp.float32).reshape(B, S, heads, Dh).transpose(0, 2, 1, 3)
    s = jnp.einsum("bhqd,bhkd->bhqk", qf, kf) * scale
    valid = (jnp.arange(S) < seq_len)[None, None, None, :]
    s = jnp.where(valid, s, -jnp.inf)
    p = jax.nn.softmax(s, axis=-1)
    o = jnp.einsum("bhqk,bhkd->bhqd", p, vf)
    return o.transpose(0, 2, 1, 3).reshape(B, S, D)


if __name__ == "__main__":
    cfg = dict(
        in_chans=4, img=16, patch=8, dim=32, heads=2, depth=2,
        mlp_dim=128, det=4, num_class=5,
    )
    cfg["num_patches"] = (cfg["img"] // cfg["patch"]) ** 2

    key = jax.random.PRNGKey(0)
    pkey, xkey, lkey1, lkey2, akey = jax.random.split(key, 5)
    params = init_params(pkey, cfg)
    x = jax.random.normal(
        xkey, (2, cfg["in_chans"], cfg["img"], cfg["img"]), jnp.float32
    )

    # --- probe 1: multi-K-block accumulation path of linear() ---------------
    xt = jax.random.normal(lkey1, (32, 512), jnp.float32)
    wt = jax.random.normal(lkey2, (512, 64), jnp.float32)
    bt = jnp.zeros((1, 64), jnp.float32)
    got = linear(xt, wt, bt, out_dtype=jnp.float32, tk_target=128)
    ref = jnp.dot(xt.astype(jnp.bfloat16), wt.astype(jnp.bfloat16),
                  preferred_element_type=jnp.float32) + bt
    assert bool(jnp.allclose(got, ref, atol=2e-2, rtol=2e-2))

    # --- probe 2: multi-KV-block online-softmax path of attention() ---------
    qa = jax.random.normal(akey, (1, 32, 3 * 32), jnp.float32)
    qq = qa[..., :32].astype(jnp.bfloat16)
    kk = qa[..., 32:64].astype(jnp.bfloat16)
    vv = qa[..., 64:].astype(jnp.bfloat16)
    att = attention(qq, kk, vv, heads=2, scale=0.25, seq_len=27, ts_target=16)
    att_ref = _attention_reference(qq, kk, vv, heads=2, scale=0.25, seq_len=27)
    assert bool(jnp.allclose(att[:, :27].astype(jnp.float32),
                             att_ref[:, :27], atol=5e-2, rtol=5e-2))

    # --- full forward --------------------------------------------------------
    out = yolos_forward(x, params, cfg)
    jax.block_until_ready(out["class"])
    jax.block_until_ready(out["bbox"])

    assert out["class"].shape == (2, cfg["det"], cfg["num_class"] + 1)
    assert out["bbox"].shape == (2, cfg["det"], 4)
    assert out["aux"] == []
    assert bool(jnp.all(out["bbox"] >= 0.0)) and bool(jnp.all(out["bbox"] <= 1.0))
    assert bool(jnp.all(jnp.isfinite(out["class"])))

    print("KERNEL_OK")
</pallas_src>

<mosaic_0001>
module attributes {stable_mosaic.version = 11 : i64} {
  func.func @_linear_kernel(%arg0: i32, %arg1: i32, %arg2: i32, %arg3: memref<32x128xbf16, #tpu.memory_space<vmem>>, %arg4: memref<128x128xbf16, #tpu.memory_space<vmem>>, %arg5: memref<1x128xf32, #tpu.memory_space<vmem>>, %arg6: memref<32x128xf32, #tpu.memory_space<vmem>>, %arg7: memref<32x128xf32, #tpu.memory_space<vmem>>) attributes {dimension_semantics = [#tpu.dimension_semantics<parallel>, #tpu.dimension_semantics<parallel>, #tpu.dimension_semantics<arbitrary>], iteration_bounds = array<i64: 1, 1, 4>, scalar_prefetch = 0 : i64, scratch_operands = 1 : i64, tpu.core_type = #tpu.core_type<tc>, window_params = [{transform_indices = @transform_0, window_bounds = array<i64: 32, 128>}, {transform_indices = @transform_1, window_bounds = array<i64: 128, 128>}, {transform_indices = @transform_2, window_bounds = array<i64: 1, 128>}, {transform_indices = @transform_3, window_bounds = array<i64: 32, 128>}]} {
    %c0 = arith.constant 0 : index
    %c0_0 = arith.constant 0 : index
    %0 = vector.load %arg3[%c0, %c0_0] : memref<32x128xbf16, #tpu.memory_space<vmem>>, vector<32x128xbf16>
    %c0_1 = arith.constant 0 : index
    %c0_2 = arith.constant 0 : index
    %1 = vector.load %arg4[%c0_1, %c0_2] : memref<128x128xbf16, #tpu.memory_space<vmem>>, vector<128x128xbf16>
    %cst = arith.constant dense<0.000000e+00> : vector<32x128xf32>
    %2 = tpu.matmul %0, %1, %cst {dimension_numbers = #tpu.dot_dimension_numbers<[1], [0], [0], [1], [0, 0, 1, 1], [], []>} : vector<32x128xbf16>, vector<128x128xbf16>, vector<32x128xf32> -> vector<32x128xf32>
    %c0_i32 = arith.constant 0 : i32
    %3 = arith.cmpi eq, %arg2, %c0_i32 : i32
    %4 = arith.extui %3 : i1 to i32
    %c0_i32_3 = arith.constant 0 : i32
    %5 = arith.cmpi ne, %4, %c0_i32_3 : i32
    scf.if %5 {
      %cst_9 = arith.constant 0.000000e+00 : f32
      %12 = vector.broadcast %cst_9 : f32 to vector<32x128xf32>
      %c0_10 = arith.constant 0 : index
      %c0_11 = arith.constant 0 : index
      %13 = vector.load %arg7[%c0_10, %c0_11] : memref<32x128xf32, #tpu.memory_space<vmem>>, vector<32x128xf32>
      tpu.vector_store %arg7[%c0_10, %c0_11], %12 {strides = array<i32>} : memref<32x128xf32, #tpu.memory_space<vmem>>, vector<32x128xf32>,
    } else {
    }
    %c0_4 = arith.constant 0 : index
    %c0_5 = arith.constant 0 : index
    %6 = vector.load %arg7[%c0_4, %c0_5] : memref<32x128xf32, #tpu.memory_space<vmem>>, vector<32x128xf32>
    %7 = arith.addf %6, %2 : vector<32x128xf32>
    %c0_6 = arith.constant 0 : index
    %c0_7 = arith.constant 0 : index
    %8 = vector.load %arg7[%c0_6, %c0_7] : memref<32x128xf32, #tpu.memory_space<vmem>>, vector<32x128xf32>
    tpu.vector_store %arg7[%c0_6, %c0_7], %7 {strides = array<i32>} : memref<32x128xf32, #tpu.memory_space<vmem>>, vector<32x128xf32>,
    %c3_i32 = arith.constant 3 : i32
    %9 = arith.cmpi eq, %arg2, %c3_i32 : i32
    %10 = arith.extui %9 : i1 to i32
    %c0_i32_8 = arith.constant 0 : i32
    %11 = arith.cmpi ne, %10, %c0_i32_8 : i32
    scf.if %11 {
      %c0_9 = arith.constant 0 : index
      %c0_10 = arith.constant 0 : index
      %12 = vector.load %arg7[%c0_9, %c0_10] : memref<32x128xf32, #tpu.memory_space<vmem>>, vector<32x128xf32>
      %c0_11 = arith.constant 0 : index
      %c0_12 = arith.constant 0 : index
      %13 = vector.load %arg5[%c0_11, %c0_12] : memref<1x128xf32, #tpu.memory_space<vmem>>, vector<1x128xf32>
      %14 = vector.broadcast %13 : vector<1x128xf32> to vector<32x128xf32>
      %15 = arith.addf %12, %14 : vector<32x128xf32>
      %c0_13 = arith.constant 0 : index
      %c0_14 = arith.constant 0 : index
      %16 = vector.load %arg6[%c0_13, %c0_14] : memref<32x128xf32, #tpu.memory_space<vmem>>, vector<32x128xf32>
      tpu.vector_store %arg6[%c0_13, %c0_14], %15 {strides = array<i32>} : memref<32x128xf32, #tpu.memory_space<vmem>>, vector<32x128xf32>,
    } else {
    }
    return
  }
  func.func @transform_0(%arg0: i32, %arg1: i32, %arg2: i32) -> (i32, i32) {
    %c0_i32 = arith.constant 0 : i32
    return %arg0, %arg2 : i32, i32
  }
  func.func @transform_1(%arg0: i32, %arg1: i32, %arg2: i32) -> (i32, i32) {
    %c0_i32 = arith.constant 0 : i32
    return %arg2, %arg1 : i32, i32
  }
  func.func @transform_2(%arg0: i32, %arg1: i32, %arg2: i32) -> (i32, i32) {
    %c0_i32 = arith.constant 0 : i32
    %c0_i32_0 = arith.constant 0 : i32
    return %c0_i32, %arg1 : i32, i32
  }
  func.func @transform_3(%arg0: i32, %arg1: i32, %arg2: i32) -> (i32, i32) {
    %c0_i32 = arith.constant 0 : i32
    return %arg0, %arg1 : i32, i32
  }
}

</mosaic_0001>

<llo_original>
// kernel: tpu_custom_call.1
$region0: #{tpu_custom_call.1}
  #allocation0 [shape = 'u32[]', space=smem, size = 0x4, offset = 0x4, fixed_abs, tag = 'smem constant byte address 0x4 - core index']
  #allocation1 [shape = 'u32[144,128]{1,0:T(1,128)}', space=vmem, size = 0x12000, scoped, tag = 'internal scratch']
  #allocation2 [shape = 'f32[32,128]{1,0:T(8,128)}', space=vmem, size = 0x4000, scoped, tag = 'scratch operand']
  %s0 = inlined_call_operand.hbm [shape: bf16[32,512], index: 0, kind: input, shape index: {}]
  %s1 = inlined_call_operand.hbm [shape: bf16[512,128], index: 1, kind: input, shape index: {}]
  %s2 = inlined_call_operand.vmem [shape: f32[1,128], index: 2, kind: input, shape index: {}]
  %s3 = inlined_call_operand.hbm [shape: f32[32,128], index: 3, kind: output, shape index: {}]
  %s4 = sld [smem:[#allocation0]]
  $region61: #{tpu_custom_call.1} parent=0
    _
  %s6 = ssub.s32 1, %s4
  %s7 = scalar_select 0, %s6, %s4
  $region1: #{tpu_custom_call.1} parent=0
    #allocation3 [shape = 'u8[16384]{0}', space=vmem, size = 0x4000, scoped, tag = 'input window, operand 0']
    #allocation4 [shape = 's32[2]{0}', space=sflag, size = 0x8, scoped, tag = 'scoped memory for tpu_custom_call.1']
    #allocation5 [shape = 's32[2]{0}', space=sflag, size = 0x8, scoped, tag = 'scoped memory for tpu_custom_call.1']
    #allocation6 [shape = 'u8[65536]{0}', space=vmem, size = 0x10000, scoped, tag = 'input window, operand 1']
    #allocation7 [shape = 's32[2]{0}', space=sflag, size = 0x8, scoped, tag = 'scoped memory for tpu_custom_call.1']
    #allocation8 [shape = 'u8[16384]{0}', space=vmem, size = 0x4000, scoped, tag = 'output window, operand 0, single buffered']
    %8 = vsyncpa [#allocation4], 0
    %s9 = scalar_lea.sflag [#allocation4], 1
    %10 = vsyncpa %s9, 0
    %11 = vsyncpa [#allocation7], 0
    %s12 = scalar_lea.sflag [#allocation7], 1
    %13 = vsyncpa %s12, 0
    %14 = vsyncpa [#allocation5], 0
    loop: start=0, step=1, limit=6
    $region2: #{tpu_custom_call.1} parent=1 // loop_pre_header
      _
    $region3: #{tpu_custom_call.1} parent=1 // loop_header
      %s16 = sphi 0, %s20
      %p17 = scmp.ge.s32.totalorder %s16, 6
      %s23 = sphi 0, %s42
      %s24 = sphi 0, %s38
      %s25 = sphi 0, %s34
      %s26 = sphi 0, %s23
      %s27 = sphi 0, %s24
      %s28 = sphi 0, %s25
      %s29 = sphi 0, %s26
      %s30 = sphi 0, %s27
      %s31 = sphi 0, %s28
      %s47 = sphi 0, %s49
      %s50 = sphi 0, %s47
      %s51 = sphi 0, %s50
      %s67 = sphi 0, %s51
      %s75 = sphi 0, %s77
      %s78 = sphi 0, %s75
      %s79 = sphi 0, %s78
      %s95 = sphi 0, %s79
      %s101 = sphi 0, %s103
      %s104 = sphi 0, %s101
      %s105 = sphi 0, %s104
      %s121 = sphi 0, %s105
      %s129 = sphi 0, %s131
      %s132 = sphi 0, %s129
      %s133 = sphi 0, %s132
      %s149 = sphi 0, %s133
    $region4: #{tpu_custom_call.1} parent=1 // loop_header_branch
      %19 = sbr.rel (%p17) target = $region8
    $region5: #{tpu_custom_call.1} parent=1 // loop_body
      %s21 = ssub.s32 %s16, 1
      %s22 = ssub.s32 %s16, 2
      %s32 = sadd.s32 1, %s25
      %p33 = scmp.ge.s32.totalorder %s32, 4
      %s34 = scalar_select %p33, 0, %s32
      %s35 = sadd.s32 1, %s24
      %s36 = scalar_select %p33, %s35, %s24
      %p37 = scmp.ge.s32.totalorder %s36, 1
      %s38 = scalar_select %p37, 0, %s36
      %s39 = sadd.s32 1, %s23
      %s40 = scalar_select %p37, %s39, %s23
      %p41 = scmp.ge.s32.totalorder %s40, 1
      %s42 = scalar_select %p41, 0, %s40
      %s43 = ssub.s32 %s23, %s42
      %s44 = ssub.s32 %s25, %s34
      %s45 = sor.u32 %s43, %s44
      %p46 = scmp.eq.s32.totalorder %s45, 0
      %s48 = sadd.s32 %s47, 1
      %s49 = scalar_select %p46, %s47, %s48
      %p52 = pneg %p46
      %p53 = scmp.eq.s32.totalorder %s16, 3
      %p54 = por %p52, %p53
      %p55 = scmp.ne.s32.totalorder %s47, %s50
      %p56 = scmp.eq.s32.totalorder %s16, 0
      %p57 = por %p55, %p56
      %p58 = scmp.ne.s32.totalorder %s47, %s50
      %p59 = scmp.eq.s32.totalorder %s21, 3
      %p60 = por %p58, %p59
      %p61 = scmp.ne.s32.totalorder %s50, %s51
      %p62 = scmp.eq.s32.totalorder %s21, 0
      %p63 = por %p61, %p62
      %p64 = scmp.ne.s32.totalorder %s50, %s51
      %p65 = scmp.eq.s32.totalorder %s22, 3
      %p66 = por %p64, %p65
      %p68 = scmp.ne.s32.totalorder %s51, %s67
      %p69 = scmp.eq.s32.totalorder %s22, 0
      %p70 = por %p68, %p69
      %s71 = ssub.s32 %s25, %s34
      %s72 = ssub.s32 %s24, %s38
      %s73 = sor.u32 %s71, %s72
      %p74 = scmp.eq.s32.totalorder %s73, 0
      %s76 = sadd.s32 %s75, 1
      %s77 = scalar_select %p74, %s75, %s76
      %p80 = pneg %p74
      %p81 = scmp.eq.s32.totalorder %s16, 3
      %p82 = por %p80, %p81
      %p83 = scmp.ne.s32.totalorder %s75, %s78
      %p84 = scmp.eq.s32.totalorder %s16, 0
      %p85 = por %p83, %p84
      %p86 = scmp.ne.s32.totalorder %s75, %s78
      %p87 = scmp.eq.s32.totalorder %s21, 3
      %p88 = por %p86, %p87
      %p89 = scmp.ne.s32.totalorder %s78, %s79
      %p90 = scmp.eq.s32.totalorder %s21, 0
      %p91 = por %p89, %p90
      %p92 = scmp.ne.s32.totalorder %s78, %s79
      %p93 = scmp.eq.s32.totalorder %s22, 3
      %p94 = por %p92, %p93
      %p96 = scmp.ne.s32.totalorder %s79, %s95
      %p97 = scmp.eq.s32.totalorder %s22, 0
      %p98 = por %p96, %p97
      %s99 = ssub.s32 %s24, %s38
      %p100 = scmp.eq.s32.totalorder %s99, 0
      %s102 = sadd.s32 %s101, 1
      %s103 = scalar_select %p100, %s101, %s102
      %p106 = pneg %p100
      %p107 = scmp.eq.s32.totalorder %s16, 3
      %p108 = por %p106, %p107
      %p109 = scmp.ne.s32.totalorder %s101, %s104
      %p110 = scmp.eq.s32.totalorder %s16, 0
      %p111 = por %p109, %p110
      %p112 = scmp.ne.s32.totalorder %s101, %s104
      %p113 = scmp.eq.s32.totalorder %s21, 3
      %p114 = por %p112, %p113
      %p115 = scmp.ne.s32.totalorder %s104, %s105
      %p116 = scmp.eq.s32.totalorder %s21, 0
      %p117 = por %p115, %p116
      %p118 = scmp.ne.s32.totalorder %s104, %s105
      %p119 = scmp.eq.s32.totalorder %s22, 3
      %p120 = por %p118, %p119
      %p122 = scmp.ne.s32.totalorder %s105, %s121
      %p123 = scmp.eq.s32.totalorder %s22, 0
      %p124 = por %p122, %p123
      %s125 = ssub.s32 %s23, %s42
      %s126 = ssub.s32 %s24, %s38
      %s127 = sor.u32 %s125, %s126
      %p128 = scmp.eq.s32.totalorder %s127, 0
      %s130 = sadd.s32 %s129, 1
      %s131 = scalar_select %p128, %s129, %s130
      %p134 = pneg %p128
      %p135 = scmp.eq.s32.totalorder %s16, 3
      %p136 = por %p134, %p135
      %p137 = scmp.ne.s32.totalorder %s129, %s132
      %p138 = scmp.eq.s32.totalorder %s16, 0
      %p139 = por %p137, %p138
      %p140 = scmp.ne.s32.totalorder %s129, %s132
      %p141 = scmp.eq.s32.totalorder %s21, 3
      %p142 = por %p140, %p141
      %p143 = scmp.ne.s32.totalorder %s132, %s133
      %p144 = scmp.eq.s32.totalorder %s21, 0
      %p145 = por %p143, %p144
      %p146 = scmp.ne.s32.totalorder %s132, %s133
      %p147 = scmp.eq.s32.totalorder %s22, 3
      %p148 = por %p146, %p147
      %p150 = scmp.ne.s32.totalorder %s133, %s149
      %p151 = scmp.eq.s32.totalorder %s22, 0
      %p152 = por %p150, %p151
      %p153 = scmp.le.s32.totalorder 1, %s16
      %p154 = scmp.lt.s32.totalorder %s16, 5
      %p155 = pnand %p153, %p154
      %p156 = pneg %p155
      // Predicated region
      $region9: #{tpu_custom_call.1} parent=5 // pred_check
        _
      $region10: #{tpu_custom_call.1} parent=5 // pred_check_branch
        %158 = sbr.rel (%p155) target = $region12
      $region11: #{tpu_custom_call.1} parent=5 // pred_region
        %s159 = ssub.s32 %s16, 1
        // Predicated region
        $region13: #{tpu_custom_call.1} parent=11 // pred_check
          %p160 = pneg %p117
        $region14: #{tpu_custom_call.1} parent=11 // pred_check_branch
          %162 = sbr.rel (%p160) target = $region16
        $region15: #{tpu_custom_call.1} parent=11 // pred_region
          %p163 = scmp.lt.s32.totalorder %s27, 0
          %s164 = scalar_select %p163, %s27, 0
          %s165 = scalar_lea.vmem %s2, %s164
        $region16: #{tpu_custom_call.1} parent=11 // pred_fallthru
          _
      $region12: #{tpu_custom_call.1} parent=5 // pred_fallthru
        _
      %p166 = scmp.lt.s32.totalorder %s16, 4
      // Predicated region
      $region17: #{tpu_custom_call.1} parent=5 // pred_check
        %p167 = pneg %p166
      $region18: #{tpu_custom_call.1} parent=5 // pred_check_branch
        %169 = sbr.rel (%p167) target = $region20
      $region19: #{tpu_custom_call.1} parent=5 // pred_region
        // Predicated region
        $region21: #{tpu_custom_call.1} parent=19 // pred_check
          %p170 = pneg %p57
        $region22: #{tpu_custom_call.1} parent=19 // pred_check_branch
          %172 = sbr.rel (%p170) target = $region24
        $region23: #{tpu_custom_call.1} parent=19 // pred_region
          %s173 = sand.u32 %s47, 1
          %s174 = scalar_lea.sflag [#allocation4], %s173
          %s175 = sand.u32 %s47, 1
          %s176 = smul.addr %s175, 16
          %s177 = scalar_lea.vmem [#allocation3], %s176
          %s178 = smul.u32 4, %s23
          %s180 = ssub.s32 256, 256
          %181 = vsyncadd %s174, %s180
          %s182 = smul.addr %s178, 4
          %s183 = sadd.s32 %s25, %s182
          %s184 = smul.addr %s183, 64
          %s185 = scalar_lea.hbm %s0, %s184
          %s186 = sshll.u32 %s177, 4
          %s187 = int_to_ptr.vmem [resolvable:$true] %s186
          %192 = dma.hbm_to_vmem [thread:$0]  %s185, 256, %s187, %s174, 256, 64, 4
        $region24: #{tpu_custom_call.1} parent=19 // pred_fallthru
          _
        // Predicated region
        $region25: #{tpu_custom_call.1} parent=19 // pred_check
          %p193 = pneg %p85
        $region26: #{tpu_custom_call.1} parent=19 // pred_check_branch
          %195 = sbr.rel (%p193) target = $region28
        $region27: #{tpu_custom_call.1} parent=19 // pred_region
          %s196 = sand.u32 %s75, 1
          %s197 = scalar_lea.sflag [#allocation7], %s196
          %s198 = sand.u32 %s75, 1
          %s199 = smul.addr %s198, 64
          %s200 = scalar_lea.vmem [#allocation6], %s199
          %s201 = smul.u32 16, %s25
          %s203 = ssub.s32 1024, 1024
          %204 = vsyncadd %s197, %s203
          %s205 = sadd.s32 %s24, %s201
          %s206 = smul.addr %s205, 64
          %s207 = scalar_lea.hbm %s1, %s206
          %s208 = sshll.u32 %s200, 4
          %s209 = int_to_ptr.vmem [resolvable:$true] %s208
          %214 = dma.hbm_to_vmem [thread:$0]  %s207, 1024, %s209, %s197, 64, 64, 4
        $region28: #{tpu_custom_call.1} parent=19 // pred_fallthru
          _
      $region20: #{tpu_custom_call.1} parent=5 // pred_fallthru
        _
      %p215 = scmp.le.s32.totalorder 1, %s16
      %p216 = scmp.lt.s32.totalorder %s16, 5
      %p217 = pnand %p215, %p216
      %p218 = pneg %p217
      // Predicated region
      $region29: #{tpu_custom_call.1} parent=5 // pred_check
        _
      $region30: #{tpu_custom_call.1} parent=5 // pred_check_branch
        %220 = sbr.rel (%p217) target = $region32
      $region31: #{tpu_custom_call.1} parent=5 // pred_region
        %s221 = ssub.s32 %s16, 1
        %s222 = sand.u32 %s50, 1
        %s223 = scalar_lea.sflag [#allocation4], %s222
        %s224 = sand.u32 %s50, 1
        %s225 = smul.addr %s224, 16
        %s226 = scalar_lea.vmem [#allocation3], %s225
        // Predicated region
        $region33: #{tpu_custom_call.1} parent=31 // pred_check
          %p227 = pneg %p63
        $region34: #{tpu_custom_call.1} parent=31 // pred_check_branch
          %229 = sbr.rel (%p227) target = $region36
        $region35: #{tpu_custom_call.1} parent=31 // pred_region
          %230 = dma.done %s223, 256
        $region36: #{tpu_custom_call.1} parent=31 // pred_fallthru
          _
        %s231 = sand.u32 %s78, 1
        %s232 = scalar_lea.sflag [#allocation7], %s231
        %s233 = sand.u32 %s78, 1
        %s234 = smul.addr %s233, 64
        %s235 = scalar_lea.vmem [#allocation6], %s234
        // Predicated region
        $region37: #{tpu_custom_call.1} parent=31 // pred_check
          %p236 = pneg %p91
        $region38: #{tpu_custom_call.1} parent=31 // pred_check_branch
          %238 = sbr.rel (%p236) target = $region40
        $region39: #{tpu_custom_call.1} parent=31 // pred_region
          %239 = dma.done %s232, 1024
        $region40: #{tpu_custom_call.1} parent=31 // pred_fallthru
          _
        %s240 = sand.u32 %s50, 1
        %s241 = scalar_lea.sflag [#allocation4], %s240
        %s242 = sand.u32 %s50, 1
        %s243 = smul.addr %s242, 16
        %s244 = scalar_lea.vmem [#allocation3], %s243
        %p245 = pneg %p63
        %p246 = pneg %p60
        %s247 = sand.u32 %s78, 1
        %s248 = scalar_lea.sflag [#allocation7], %s247
        %s249 = sand.u32 %s78, 1
        %s250 = smul.addr %s249, 64
        %s251 = scalar_lea.vmem [#allocation6], %s250
        %p252 = pneg %p91
        %p253 = pneg %p88
        %p254 = scmp.lt.s32.totalorder %s27, 0
        %s255 = scalar_select %p254, %s27, 0
        %s256 = scalar_lea.vmem %s2, %s255
        %p257 = pneg %p117
        %p258 = pneg %p114
        %p259 = pneg %p145
        %p260 = pneg %p142
        %s261 = smul.u32 4, %s26
        %s262 = smul.u32 16, %s28
        %p263 = scmp.lt.s32.totalorder %s27, 0
        %s264 = scalar_select %p263, %s27, 0
        %s265 = scalar_lea.vmem %s2, %s264
        %s266 = smul.u32 4, %s26
        %v268 = vld [vmem:[%s226] sm:$0xf]
        %v269 = vld [vmem:[%s226 + $0x4] sm:$0xf]
        %v270 = vld [vmem:[%s226 + $0x8] sm:$0xf]
        %v271 = vld [vmem:[%s226 + $0xc] sm:$0xf]
        %v272 = vld [vmem:[%s235] sm:$0xf]
        %v273 = vld [vmem:[%s235 + $0x4] sm:$0xf]
        %v274 = vld [vmem:[%s235 + $0x8] sm:$0xf]
        %v275 = vld [vmem:[%s235 + $0xc] sm:$0xf]
        %v276 = vld [vmem:[%s235 + $0x10] sm:$0xf]
        %v277 = vld [vmem:[%s235 + $0x14] sm:$0xf]
        %v278 = vld [vmem:[%s235 + $0x18] sm:$0xf]
        %v279 = vld [vmem:[%s235 + $0x1c] sm:$0xf]
        %v280 = vld [vmem:[%s235 + $0x20] sm:$0xf]
        %v281 = vld [vmem:[%s235 + $0x24] sm:$0xf]
        %v282 = vld [vmem:[%s235 + $0x28] sm:$0xf]
        %v283 = vld [vmem:[%s235 + $0x2c] sm:$0xf]
        %v284 = vld [vmem:[%s235 + $0x30] sm:$0xf]
        %v285 = vld [vmem:[%s235 + $0x34] sm:$0xf]
        %v286 = vld [vmem:[%s235 + $0x38] sm:$0xf]
        %v287 = vld [vmem:[%s235 + $0x3c] sm:$0xf]
        %v292 = vunpack.c.l.b16 %v268
        %v293 = vunpack.c.l.b16 %v269
        %v294 = vunpack.c.l.b16 %v270
        %v295 = vunpack.c.l.b16 %v271
        %v296 = vpack.c.b16 %v293, %v292
        %v297 = vpack.c.b16 %v295, %v294
        %v316 = vunpack.c.l.b16 %v272
        %v317 = vunpack.c.l.b16 %v273
        %v318 = vunpack.c.l.b16 %v274
        %v319 = vunpack.c.l.b16 %v275
        %v320 = vunpack.c.l.b16 %v276
        %v321 = vunpack.c.l.b16 %v277
        %v322 = vunpack.c.l.b16 %v278
        %v323 = vunpack.c.l.b16 %v279
        %v324 = vunpack.c.l.b16 %v280
        %v325 = vunpack.c.l.b16 %v281
        %v326 = vunpack.c.l.b16 %v282
        %v327 = vunpack.c.l.b16 %v283
        %v328 = vunpack.c.l.b16 %v284
        %v329 = vunpack.c.l.b16 %v285
        %v330 = vunpack.c.l.b16 %v286
        %v331 = vunpack.c.l.b16 %v287
        %v332 = vpack.c.b16 %v317, %v316
        %v333 = vpack.c.b16 %v319, %v318
        %v334 = vpack.c.b16 %v321, %v320
        %v335 = vpack.c.b16 %v323, %v322
        %v336 = vpack.c.b16 %v325, %v324
        %v337 = vpack.c.b16 %v327, %v326
        %v338 = vpack.c.b16 %v329, %v328
        %v339 = vpack.c.b16 %v331, %v330
        %348 = vmatprep.subr.bf16.mxu0 0
        %349 = vmatpush1.bf16.msra.mxu0 %v332
        %350 = vmatprep.subr.bf16.mxu0 0
        %351 = vmatpush1.bf16.msra.mxu0 %v333
        %352 = vmatprep.subr.bf16.mxu0 0
        %353 = vmatpush1.bf16.msra.mxu0 %v334
        %354 = vmatprep.subr.bf16.mxu0 0
        %355 = vmatpush1.bf16.msra.mxu0 %v335
        %356 = vmatprep.subr.bf16.mxu0 0
        %357 = vmatpush1.bf16.msra.mxu0 %v336
        %358 = vmatprep.subr.bf16.mxu0 0
        %359 = vmatpush1.bf16.msra.mxu0 %v337
        %360 = vmatprep.subr.bf16.mxu0 0
        %361 = vmatpush1.bf16.msra.mxu0 %v338
        %362 = vmatprep.subr.bf16.mxu0 0
        %363 = vmatpush1.bf16.msra.mxu0 %v339
        %364 = vmatprep.subr.bf16.mxu0 0
        %365 = vmatpush1.bf16.msra.mxu0 0
        %366 = vmatprep.subr.bf16.mxu0 0
        %367 = vmatpush1.bf16.msra.mxu0 0
        %368 = vmatprep.subr.bf16.mxu0 0
        %369 = vmatpush1.bf16.msra.mxu0 0
        %370 = vmatprep.subr.bf16.mxu0 0
        %371 = vmatpush1.bf16.msra.mxu0 0
        %372 = vmatprep.subr.bf16.mxu0 0
        %373 = vmatpush1.bf16.msra.mxu0 0
        %374 = vmatprep.subr.bf16.mxu0 0
        %375 = vmatpush1.bf16.msra.mxu0 0
        %376 = vmatprep.subr.bf16.mxu0 0
        %377 = vmatpush1.bf16.msra.mxu0 0
        %378 = vmatprep.subr.bf16.mxu0 0
        %379 = vmatpush1.bf16.msra.mxu0 0
        %380 = vmatprep.mubr.bf16.mxu0 0
        %381 = vmatmul.mubr.bf16.gmra.mrb[0].mxu0 %v296
        %v382 = vpop.f32.mrb[0].mxu0
        %v383 = vadd.f32 0.0, %v382
        %v384 = vpop.f32.mrb[0].mxu0
        %v385 = vpop.f32.mrb[0].mxu0
        %v386 = vadd.f32 0.0, %v385
        %v387 = vpop.f32.mrb[0].mxu0
        %388 = vmatprep.mubr.bf16.mxu0 0
        %389 = vmatmul.mubr.bf16.gmra.mrb[0].mxu0 %v297
        %v390 = vpop.f32.mrb[0].mxu0
        %v391 = vadd.f32 0.0, %v390
        %v392 = vpop.f32.mrb[0].mxu0
        %v393 = vpop.f32.mrb[0].mxu0
        %v394 = vadd.f32 0.0, %v393
        %v395 = vpop.f32.mrb[0].mxu0
        %396 = vdwg.mxu0
        %p397 = scmp.eq.s32.totalorder %s28, 0
        // Predicated region
        $region41: #{tpu_custom_call.1} parent=31 // pred_check
          %p398 = pneg %p397
        $region42: #{tpu_custom_call.1} parent=31 // pred_check_branch
          %400 = sbr.rel (%p398) target = $region44
        $region43: #{tpu_custom_call.1} parent=31 // pred_region
          %401 = vst [vmem:[#allocation2] sm:$0xff] 0.0
          %402 = vst [vmem:[#allocation2 + $0x8] sm:$0xff] 0.0
          %403 = vst [vmem:[#allocation2 + $0x10] sm:$0xff] 0.0
          %404 = vst [vmem:[#allocation2 + $0x18] sm:$0xff] 0.0
        $region44: #{tpu_custom_call.1} parent=31 // pred_fallthru
          _
        %v405 = vld [vmem:[#allocation2] sm:$0xff]
        %v406 = vld [vmem:[#allocation2 + $0x8] sm:$0xff]
        %v407 = vld [vmem:[#allocation2 + $0x10] sm:$0xff]
        %v408 = vld [vmem:[#allocation2 + $0x18] sm:$0xff]
        %v409 = vadd.f32 %v405, %v383
        %v410 = vadd.f32 %v406, %v386
        %v411 = vadd.f32 %v407, %v391
        %v412 = vadd.f32 %v408, %v394
        %413 = vst [vmem:[#allocation2] sm:$0xff] %v409
        %414 = vst [vmem:[#allocation2 + $0x8] sm:$0xff] %v410
        %415 = vst [vmem:[#allocation2 + $0x10] sm:$0xff] %v411
        %416 = vst [vmem:[#allocation2 + $0x18] sm:$0xff] %v412
        %p417 = scmp.eq.s32.totalorder %s28, 3
        // Predicated region
        $region45: #{tpu_custom_call.1} parent=31 // pred_check
          %p418 = pneg %p417
        $region46: #{tpu_custom_call.1} parent=31 // pred_check_branch
          %420 = sbr.rel (%p418) target = $region48
        $region47: #{tpu_custom_call.1} parent=31 // pred_region
          %v421 = vld [vmem:[#allocation2] sm:$0xff]
          %v422 = vld [vmem:[#allocation2 + $0x8] sm:$0xff]
          %v423 = vld [vmem:[#allocation2 + $0x10] sm:$0xff]
          %v424 = vld [vmem:[#allocation2 + $0x18] sm:$0xff]
          %v425 = vld [vmem:[%s265] sm:$0x1]
          %v427 = vlaneseq
          %v428 = vshrl.u32 %v427, 7
          %v429 = vsub.s32 0, %v428
          %v430 = vrot.slane %v425, %v429
          %v432 = vadd.f32 %v421, %v430
          %v433 = vadd.f32 %v422, %v430
          %v434 = vadd.f32 %v423, %v430
          %v435 = vadd.f32 %v424, %v430
          %436 = vst [vmem:[#allocation8] sm:$0xff] %v432
          %437 = vst [vmem:[#allocation8 + $0x8] sm:$0xff] %v433
          %438 = vst [vmem:[#allocation8 + $0x10] sm:$0xff] %v434
          %439 = vst [vmem:[#allocation8 + $0x18] sm:$0xff] %v435
        $region48: #{tpu_custom_call.1} parent=31 // pred_fallthru
          _
        // Predicated region
        $region49: #{tpu_custom_call.1} parent=31 // pred_check
          %p440 = pneg %p142
        $region50: #{tpu_custom_call.1} parent=31 // pred_check_branch
          %442 = sbr.rel (%p440) target = $region52
        $region51: #{tpu_custom_call.1} parent=31 // pred_region
          %s443 = smul.u32 4, %s26
          %s445 = ssub.s32 512, 512
          %446 = vsyncadd [#allocation5], %s445
          %s447 = sadd.s32 %s27, %s443
          %s448 = smul.addr %s447, 128
          %s449 = scalar_lea.hbm %s3, %s448
          %s450 = sshll.u32 [#allocation8], 4
          %s451 = int_to_ptr.vmem [resolvable:$true] %s450
          %456 = dma.vmem_to_hbm [thread:$0]  %s451, 512, %s449, [#allocation5], 128, 128, 8
        $region52: #{tpu_custom_call.1} parent=31 // pred_fallthru
          _
        // Predicated region
        $region53: #{tpu_custom_call.1} parent=31 // pred_check
          %p457 = pneg %p142
        $region54: #{tpu_custom_call.1} parent=31 // pred_check_branch
          %459 = sbr.rel (%p457) target = $region56
        $region55: #{tpu_custom_call.1} parent=31 // pred_region
          %460 = dma.done [#allocation5], 512
        $region56: #{tpu_custom_call.1} parent=31 // pred_fallthru
          _
      $region32: #{tpu_custom_call.1} parent=5 // pred_fallthru
        _
      %p461 = scmp.le.s32.totalorder 2, %s16
      // Predicated region
      $region57: #{tpu_custom_call.1} parent=5 // pred_check
        %p462 = pneg %p461
      $region58: #{tpu_custom_call.1} parent=5 // pred_check_branch
        %464 = sbr.rel (%p462) target = $region60
      $region59: #{tpu_custom_call.1} parent=5 // pred_region
        %s465 = ssub.s32 %s16, 2
      $region60: #{tpu_custom_call.1} parent=5 // pred_fallthru
        _
    $region6: #{tpu_custom_call.1} parent=1 // loop_footer
      %s20 = sadd.s32 1, %s16
    $region7: #{tpu_custom_call.1} parent=1 // loop_footer_branch
      %15 = sbr.rel target = $region3
    $region8: #{tpu_custom_call.1} parent=1 // loop_exit
      _
    %466 = vsyncpa [#allocation4], 1
    %s467 = scalar_lea.sflag [#allocation4], 1
    %468 = vsyncpa %s467, 1
    %469 = vsyncpa [#allocation7], 1
    %s470 = scalar_lea.sflag [#allocation7], 1
    %471 = vsyncpa %s470, 1
    %472 = vsyncpa [#allocation5], 1
    %s473 = scalar_lea.sflag [#allocation5], 1
    %474 = vsyncpa %s473, 1

</llo_original>
